<compile_context>
chip_gen: v7x
topology: tpu7x:2x2x1
jax: 0.10.0
libtpu: 0.0.40
codegen_flags: <defaults>
</compile_context>

<pallas_src>
import jax
import jax.numpy as jnp
from jax.experimental import pallas as pl
from jax.experimental.pallas import tpu as pltpu

# ---------------- problem sizes (small, consistent with a PaiNN readout) ----
N = 128          # number of atoms / nodes (rows)
H = 32           # hidden feature size entering readout_mlp
H2 = H // 2      # hidden size of intermediate readout layer
OUT = 1          # scalar per-atom readout
LANES = 128      # lane-dense output width (a1 in [0:H2), y at lane H2)
TN = 64          # row tile (multiple of 8)


def readout_kernel(x_ref, w1t_ref, b1_ref, w2r_ref, b2_ref, out_ref):
    """Fused readout-MLP forward for one row tile.

    x_ref   : (TN, H)       node-feature row tile
    w1t_ref : (H, LANES)    Linear1 weight, (in, out) layout, zero-padded lanes
    b1_ref  : (1, LANES)    Linear1 bias, zero-padded lanes
    w2r_ref : (1, LANES)    Linear2 weight as a row, zero-padded lanes
    b2_ref  : (1,)  SMEM    Linear2 bias (scalar)
    out_ref : (TN, LANES)   lanes [0:H2) = a1 (Linear2 hook input),
                            lane H2     = y  (model readout output)
    """
    x = x_ref[...]

    # Linear1 (MXU, full 128 output lanes thanks to zero padding) + SiLU.
    h1 = jnp.dot(x, w1t_ref[...], preferred_element_type=jnp.float32) + b1_ref[...]
    a1 = h1 * jax.nn.sigmoid(h1)                      # (TN, LANES); pad lanes stay 0

    # Linear2 with OUT=1 as VPU multiply + lane reduction (no 1-wide MXU matmul).
    # w2r is zero beyond lane H2, so the full-lane sum equals the H2-wide dot.
    y = jnp.sum(a1 * w2r_ref[...], axis=-1, keepdims=True) + b2_ref[0]   # (TN, 1)

    # Pack y into lane H2 of the (zero there) activation tile -> one dense store.
    lane = jax.lax.broadcasted_iota(jnp.int32, out_ref.shape, 1)
    out_ref[...] = jnp.where(lane == H2, y, a1).astype(out_ref.dtype)


def prepare_readout_params(w1, b1, w2, b2):
    """One-time conversion from PyTorch Linear layout to kernel layout.

    w1: (H2, H), b1: (H2,), w2: (OUT, H2), b2: (OUT,)
    Returns lane-padded (in, out) weights so no per-call transpose is emitted.
    """
    w1 = jnp.asarray(w1, jnp.float32)
    b1 = jnp.asarray(b1, jnp.float32)
    w2 = jnp.asarray(w2, jnp.float32)
    b2 = jnp.asarray(b2, jnp.float32)
    w1t = jnp.zeros((H, LANES), jnp.float32).at[:, :H2].set(w1.T)
    b1r = jnp.zeros((1, LANES), jnp.float32).at[:, :H2].set(b1.reshape(1, -1))
    w2r = jnp.zeros((1, LANES), jnp.float32).at[:, :H2].set(w2.reshape(1, -1))
    b2s = b2.reshape((1,))
    # TODO(synk): optionally cast x/w1t to bfloat16 on v6e/v7x (keep SiLU /
    # accumulation in f32); kept f32 here for exact parity with the reference.
    return w1t, b1r, w2r, b2s


def feature_extractor_forward(x, params):
    """Mirrors FeatureExtractor.forward: returns ((features, grads[::-1]), y)."""
    w1t, b1r, w2r, b2s = params
    n = x.shape[0]

    # Pad rows to a multiple of the row tile (sliced off below).
    n_pad = pl.cdiv(n, TN) * TN
    x_in = x if n_pad == n else jnp.zeros((n_pad, H), x.dtype).at[:n, :].set(x)

    out = pl.pallas_call(
        readout_kernel,
        out_shape=jax.ShapeDtypeStruct((n_pad, LANES), x.dtype),
        grid=(n_pad // TN,),
        in_specs=[
            pl.BlockSpec((TN, H), lambda i: (i, 0)),          # row-tiled input
            pl.BlockSpec((H, LANES), lambda i: (0, 0)),       # weights resident
            pl.BlockSpec((1, LANES), lambda i: (0, 0)),
            pl.BlockSpec((1, LANES), lambda i: (0, 0)),
            pl.BlockSpec(memory_space=pltpu.MemorySpace.SMEM),  # scalar b2
        ],
        out_specs=pl.BlockSpec((TN, LANES), lambda i: (i, 0)),  # lane-dense output
        compiler_params=pltpu.CompilerParams(
            dimension_semantics=("parallel",),   # megacore-shard rows
        ),
    )(x_in, w1t, b1r, w2r, b2s)

    a1 = out[:n, :H2]            # Linear2 input (hook capture, pre-ones)
    y = out[:n, H2:H2 + OUT]     # model readout output

    ones = jnp.ones((n, 1), x.dtype)
    feat1 = jnp.concatenate([x, ones], axis=-1)    # hook on Linear1 input (pure XLA)
    feat2 = jnp.concatenate([a1, ones], axis=-1)   # hook on Linear2 input

    features = [feat1, feat2]
    grads = []  # TODO(synk): save_grads_hook only fires on backward; out of scope here.
    return (features, grads[::-1]), y


if __name__ == "__main__":
    key = jax.random.PRNGKey(0)
    kx, kw1, kb1, kw2, kb2 = jax.random.split(key, 5)

    # deterministic synthetic parameters (PyTorch Linear shapes)
    x = jax.random.normal(kx, (N, H), dtype=jnp.float32)
    w1 = jax.random.normal(kw1, (H2, H), dtype=jnp.float32) * 0.1
    b1 = jax.random.normal(kb1, (H2,), dtype=jnp.float32) * 0.1
    w2 = jax.random.normal(kw2, (OUT, H2), dtype=jnp.float32) * 0.1
    b2 = jax.random.normal(kb2, (OUT,), dtype=jnp.float32) * 0.1

    params = prepare_readout_params(w1, b1, w2, b2)   # one-time, outside hot path
    (features, grads), y = feature_extractor_forward(x, params)
    jax.block_until_ready(features)
    jax.block_until_ready(y)

    # reference check in plain JAX
    f1_ref = jnp.concatenate([x, jnp.ones((N, 1), x.dtype)], axis=-1)
    h1 = x @ w1.T + b1
    a1 = h1 * jax.nn.sigmoid(h1)
    f2_ref = jnp.concatenate([a1, jnp.ones((N, 1), x.dtype)], axis=-1)
    y_ref = a1 @ w2.T + b2
    assert jnp.allclose(features[0], f1_ref, atol=1e-5)
    assert jnp.allclose(features[1], f2_ref, atol=1e-5)
    assert jnp.allclose(y, y_ref, atol=1e-5)
    assert grads == []

    print("KERNEL_OK")
</pallas_src>

<mosaic_0001>
module attributes {stable_mosaic.version = 11 : i64} {
  func.func @readout_kernel(%arg0: i32, %arg1: memref<64x32xf32, #tpu.memory_space<vmem>>, %arg2: memref<32x128xf32, #tpu.memory_space<vmem>>, %arg3: memref<1x128xf32, #tpu.memory_space<vmem>>, %arg4: memref<1x128xf32, #tpu.memory_space<vmem>>, %arg5: memref<1xf32, #tpu.memory_space<smem>>, %arg6: memref<64x128xf32, #tpu.memory_space<vmem>>) attributes {dimension_semantics = [#tpu.dimension_semantics<parallel>], iteration_bounds = array<i64: 2>, scalar_prefetch = 0 : i64, scratch_operands = 0 : i64, tpu.core_type = #tpu.core_type<tc>, window_params = [{transform_indices = @transform_0, window_bounds = array<i64: 64, 32>}, {pipeline_mode = #tpu.pipeline_mode<synchronous>, transform_indices = @transform_1, window_bounds = array<i64: 32, 128>}, {pipeline_mode = #tpu.pipeline_mode<synchronous>, transform_indices = @transform_2, window_bounds = array<i64: 1, 128>}, {pipeline_mode = #tpu.pipeline_mode<synchronous>, transform_indices = @transform_3, window_bounds = array<i64: 1, 128>}, {transform_indices = @transform_4, window_bounds = array<i64: 1>}, {transform_indices = @transform_5, window_bounds = array<i64: 64, 128>}]} {
    %c0 = arith.constant 0 : index
    %c0_0 = arith.constant 0 : index
    %0 = vector.load %arg1[%c0, %c0_0] : memref<64x32xf32, #tpu.memory_space<vmem>>, vector<64x32xf32>
    %c0_1 = arith.constant 0 : index
    %c0_2 = arith.constant 0 : index
    %1 = vector.load %arg2[%c0_1, %c0_2] : memref<32x128xf32, #tpu.memory_space<vmem>>, vector<32x128xf32>
    %cst = arith.constant dense<0.000000e+00> : vector<64x128xf32>
    %2 = tpu.matmul %0, %1, %cst {dimension_numbers = #tpu.dot_dimension_numbers<[1], [0], [0], [1], [0, 0, 1, 1], [], []>} : vector<64x32xf32>, vector<32x128xf32>, vector<64x128xf32> -> vector<64x128xf32>
    %c0_3 = arith.constant 0 : index
    %c0_4 = arith.constant 0 : index
    %3 = vector.load %arg3[%c0_3, %c0_4] : memref<1x128xf32, #tpu.memory_space<vmem>>, vector<1x128xf32>
    %4 = vector.broadcast %3 : vector<1x128xf32> to vector<64x128xf32>
    %5 = arith.addf %2, %4 : vector<64x128xf32>
    %6 = arith.negf %5 : vector<64x128xf32>
    %7 = math.exp %6 : vector<64x128xf32>
    %cst_5 = arith.constant 1.000000e+00 : f32
    %8 = vector.broadcast %cst_5 : f32 to vector<64x128xf32>
    %9 = arith.addf %8, %7 : vector<64x128xf32>
    %10 = arith.divf %8, %9 : vector<64x128xf32>
    %11 = arith.mulf %5, %10 : vector<64x128xf32>
    %c0_6 = arith.constant 0 : index
    %c0_7 = arith.constant 0 : index
    %12 = vector.load %arg4[%c0_6, %c0_7] : memref<1x128xf32, #tpu.memory_space<vmem>>, vector<1x128xf32>
    %13 = vector.broadcast %12 : vector<1x128xf32> to vector<64x128xf32>
    %14 = arith.mulf %11, %13 : vector<64x128xf32>
    %cst_8 = arith.constant dense<0.000000e+00> : vector<64xf32>
    %15 = vector.multi_reduction <add>, %14, %cst_8 [1] : vector<64x128xf32> to vector<64xf32>
    %16 = vector.shape_cast %15 : vector<64xf32> to vector<64x1xf32>
    %c0_9 = arith.constant 0 : index
    %17 = memref.load %arg5[%c0_9] : memref<1xf32, #tpu.memory_space<smem>>
    %18 = vector.broadcast %17 : f32 to vector<64x1xf32>
    %19 = arith.addf %16, %18 : vector<64x1xf32>
    %20 = tpu.iota {dimensions = array<i32: 1>} : vector<64x128xi32>
    %c16_i32 = arith.constant 16 : i32
    %21 = vector.broadcast %c16_i32 : i32 to vector<64x128xi32>
    %22 = arith.cmpi eq, %20, %21 : vector<64x128xi32>
    %23 = vector.shape_cast %19 : vector<64x1xf32> to vector<64x1xf32>
    %24 = vector.broadcast %23 : vector<64x1xf32> to vector<64x128xf32>
    %25 = arith.select %22, %24, %11 : vector<64x128xi1>, vector<64x128xf32>
    %c0_10 = arith.constant 0 : index
    %c0_11 = arith.constant 0 : index
    %26 = vector.load %arg6[%c0_10, %c0_11] : memref<64x128xf32, #tpu.memory_space<vmem>>, vector<64x128xf32>
    tpu.vector_store %arg6[%c0_10, %c0_11], %25 {strides = array<i32>} : memref<64x128xf32, #tpu.memory_space<vmem>>, vector<64x128xf32>,
    return
  }
  func.func @transform_0(%arg0: i32) -> (i32, i32) {
    %c0_i32 = arith.constant 0 : i32
    %c0_i32_0 = arith.constant 0 : i32
    return %arg0, %c0_i32 : i32, i32
  }
  func.func @transform_1(%arg0: i32) -> (i32, i32) {
    %c0_i32 = arith.constant 0 : i32
    %c0_i32_0 = arith.constant 0 : i32
    %c0_i32_1 = arith.constant 0 : i32
    return %c0_i32, %c0_i32_0 : i32, i32
  }
  func.func @transform_2(%arg0: i32) -> (i32, i32) {
    %c0_i32 = arith.constant 0 : i32
    %c0_i32_0 = arith.constant 0 : i32
    %c0_i32_1 = arith.constant 0 : i32
    return %c0_i32, %c0_i32_0 : i32, i32
  }
  func.func @transform_3(%arg0: i32) -> (i32, i32) {
    %c0_i32 = arith.constant 0 : i32
    %c0_i32_0 = arith.constant 0 : i32
    %c0_i32_1 = arith.constant 0 : i32
    return %c0_i32, %c0_i32_0 : i32, i32
  }
  func.func @transform_4(%arg0: i32) -> i32 {
    %c0_i32 = arith.constant 0 : i32
    %c0_i32_0 = arith.constant 0 : i32
    return %c0_i32 : i32
  }
  func.func @transform_5(%arg0: i32) -> (i32, i32) {
    %c0_i32 = arith.constant 0 : i32
    %c0_i32_0 = arith.constant 0 : i32
    return %arg0, %c0_i32 : i32, i32
  }
}

</mosaic_0001>

<llo_original>
// kernel: tpu_custom_call.1
$region0: #{tpu_custom_call.1}
  #allocation0 [shape = 'u32[]', space=smem, size = 0x4, offset = 0x4, fixed_abs, tag = 'smem constant byte address 0x4 - core index']
  #allocation1 [shape = 'u32[144,128]{1,0:T(1,128)}', space=vmem, size = 0x12000, scoped, tag = 'internal scratch']
  #allocation2 [shape = 'f32[1]{0:T(128)S(6)}', space=smem, size = 0x200, scoped, tag = 'scoped memory for tpu_custom_call.1']
  %s0 = inlined_call_operand.vmem [shape: f32[128,32], index: 0, kind: input, shape index: {}]
  %s1 = inlined_call_operand.vmem [shape: f32[32,128], index: 1, kind: input, shape index: {}]
  %s2 = inlined_call_operand.vmem [shape: f32[1,128], index: 2, kind: input, shape index: {}]
  %s3 = inlined_call_operand.vmem [shape: f32[1,128], index: 3, kind: input, shape index: {}]
  %s4 = inlined_call_operand.<no memory space> [shape: f32[1], index: 4, kind: input, shape index: {}]
  %s5 = inlined_call_operand.hbm [shape: f32[128,128], index: 5, kind: output, shape index: {}]
  %s6 = sld [smem:[#allocation0]]
  $region53: #{tpu_custom_call.1} parent=0
    _
  %s8 = ssub.s32 1, %s6
  %s9 = scalar_select 0, %s8, %s6
  %10 = sst [smem:[#allocation2]] %s4
  $region1: #{tpu_custom_call.1} parent=0
    #allocation3 [shape = 'u8[65536]{0}', space=vmem, size = 0x10000, scoped, tag = 'output window, operand 0']
    #allocation4 [shape = 's32[2]{0}', space=sflag, size = 0x8, scoped, tag = 'scoped memory for tpu_custom_call.1']
    %11 = vsyncpa [#allocation4], 0
    %s12 = scalar_lea.sflag [#allocation4], 1
    %13 = vsyncpa %s12, 0
    loop: start=0, step=1, limit=4
    $region2: #{tpu_custom_call.1} parent=1 // loop_pre_header
      _
    $region3: #{tpu_custom_call.1} parent=1 // loop_header
      %s15 = sphi 0, %s19
      %p16 = scmp.ge.s32.totalorder %s15, 4
      %s25 = sphi 0, %s27
      %s28 = sphi 0, %s25
      %s29 = sphi 0, %s28
      %s45 = sphi 0, %s29
      %s49 = sphi 0, %s49
      %s51 = sphi 0, %s49
      %s52 = sphi 0, %s51
      %s66 = sphi 0, %s52
      %s70 = sphi 0, %s70
      %s72 = sphi 0, %s70
      %s73 = sphi 0, %s72
      %s87 = sphi 0, %s73
      %s91 = sphi 0, %s91
      %s93 = sphi 0, %s91
      %s94 = sphi 0, %s93
      %s108 = sphi 0, %s94
      %s112 = sphi 0, %s112
      %s114 = sphi 0, %s112
      %s115 = sphi 0, %s114
      %s129 = sphi 0, %s115
      %s135 = sphi 0, %s137
      %s138 = sphi 0, %s135
      %s139 = sphi 0, %s138
      %s155 = sphi 0, %s139
    $region4: #{tpu_custom_call.1} parent=1 // loop_header_branch
      %18 = sbr.rel (%p16) target = $region8
    $region5: #{tpu_custom_call.1} parent=1 // loop_body
      %s20 = ssub.s32 %s15, 1
      %s21 = ssub.s32 %s15, 2
      %s22 = sadd.s32 %s15, 1
      %s23 = ssub.s32 %s15, %s22
      %p24 = scmp.eq.s32.totalorder %s23, 0
      %s26 = sadd.s32 %s25, 1
      %s27 = scalar_select %p24, %s25, %s26
      %p30 = pneg %p24
      %p31 = scmp.eq.s32.totalorder %s15, 1
      %p32 = por %p30, %p31
      %p33 = scmp.ne.s32.totalorder %s25, %s28
      %p34 = scmp.eq.s32.totalorder %s15, 0
      %p35 = por %p33, %p34
      %p36 = scmp.ne.s32.totalorder %s25, %s28
      %p37 = scmp.eq.s32.totalorder %s20, 1
      %p38 = por %p36, %p37
      %p39 = scmp.ne.s32.totalorder %s28, %s29
      %p40 = scmp.eq.s32.totalorder %s20, 0
      %p41 = por %p39, %p40
      %p42 = scmp.ne.s32.totalorder %s28, %s29
      %p43 = scmp.eq.s32.totalorder %s21, 1
      %p44 = por %p42, %p43
      %p46 = scmp.ne.s32.totalorder %s29, %s45
      %p47 = scmp.eq.s32.totalorder %s21, 0
      %p48 = por %p46, %p47
      %s50 = sadd.s32 %s49, 1
      %p53 = scmp.eq.s32.totalorder %s15, 1
      %p54 = scmp.ne.s32.totalorder %s49, %s51
      %p55 = scmp.eq.s32.totalorder %s15, 0
      %p56 = por %p54, %p55
      %p57 = scmp.ne.s32.totalorder %s49, %s51
      %p58 = scmp.eq.s32.totalorder %s20, 1
      %p59 = por %p57, %p58
      %p60 = scmp.ne.s32.totalorder %s51, %s52
      %p61 = scmp.eq.s32.totalorder %s20, 0
      %p62 = por %p60, %p61
      %p63 = scmp.ne.s32.totalorder %s51, %s52
      %p64 = scmp.eq.s32.totalorder %s21, 1
      %p65 = por %p63, %p64
      %p67 = scmp.ne.s32.totalorder %s52, %s66
      %p68 = scmp.eq.s32.totalorder %s21, 0
      %p69 = por %p67, %p68
      %s71 = sadd.s32 %s70, 1
      %p74 = scmp.eq.s32.totalorder %s15, 1
      %p75 = scmp.ne.s32.totalorder %s70, %s72
      %p76 = scmp.eq.s32.totalorder %s15, 0
      %p77 = por %p75, %p76
      %p78 = scmp.ne.s32.totalorder %s70, %s72
      %p79 = scmp.eq.s32.totalorder %s20, 1
      %p80 = por %p78, %p79
      %p81 = scmp.ne.s32.totalorder %s72, %s73
      %p82 = scmp.eq.s32.totalorder %s20, 0
      %p83 = por %p81, %p82
      %p84 = scmp.ne.s32.totalorder %s72, %s73
      %p85 = scmp.eq.s32.totalorder %s21, 1
      %p86 = por %p84, %p85
      %p88 = scmp.ne.s32.totalorder %s73, %s87
      %p89 = scmp.eq.s32.totalorder %s21, 0
      %p90 = por %p88, %p89
      %s92 = sadd.s32 %s91, 1
      %p95 = scmp.eq.s32.totalorder %s15, 1
      %p96 = scmp.ne.s32.totalorder %s91, %s93
      %p97 = scmp.eq.s32.totalorder %s15, 0
      %p98 = por %p96, %p97
      %p99 = scmp.ne.s32.totalorder %s91, %s93
      %p100 = scmp.eq.s32.totalorder %s20, 1
      %p101 = por %p99, %p100
      %p102 = scmp.ne.s32.totalorder %s93, %s94
      %p103 = scmp.eq.s32.totalorder %s20, 0
      %p104 = por %p102, %p103
      %p105 = scmp.ne.s32.totalorder %s93, %s94
      %p106 = scmp.eq.s32.totalorder %s21, 1
      %p107 = por %p105, %p106
      %p109 = scmp.ne.s32.totalorder %s94, %s108
      %p110 = scmp.eq.s32.totalorder %s21, 0
      %p111 = por %p109, %p110
      %s113 = sadd.s32 %s112, 1
      %p116 = scmp.eq.s32.totalorder %s15, 1
      %p117 = scmp.ne.s32.totalorder %s112, %s114
      %p118 = scmp.eq.s32.totalorder %s15, 0
      %p119 = por %p117, %p118
      %p120 = scmp.ne.s32.totalorder %s112, %s114
      %p121 = scmp.eq.s32.totalorder %s20, 1
      %p122 = por %p120, %p121
      %p123 = scmp.ne.s32.totalorder %s114, %s115
      %p124 = scmp.eq.s32.totalorder %s20, 0
      %p125 = por %p123, %p124
      %p126 = scmp.ne.s32.totalorder %s114, %s115
      %p127 = scmp.eq.s32.totalorder %s21, 1
      %p128 = por %p126, %p127
      %p130 = scmp.ne.s32.totalorder %s115, %s129
      %p131 = scmp.eq.s32.totalorder %s21, 0
      %p132 = por %p130, %p131
      %s133 = ssub.s32 %s15, %s22
      %p134 = scmp.eq.s32.totalorder %s133, 0
      %s136 = sadd.s32 %s135, 1
      %s137 = scalar_select %p134, %s135, %s136
      %p140 = pneg %p134
      %p141 = scmp.eq.s32.totalorder %s15, 1
      %p142 = por %p140, %p141
      %p143 = scmp.ne.s32.totalorder %s135, %s138
      %p144 = scmp.eq.s32.totalorder %s15, 0
      %p145 = por %p143, %p144
      %p146 = scmp.ne.s32.totalorder %s135, %s138
      %p147 = scmp.eq.s32.totalorder %s20, 1
      %p148 = por %p146, %p147
      %p149 = scmp.ne.s32.totalorder %s138, %s139
      %p150 = scmp.eq.s32.totalorder %s20, 0
      %p151 = por %p149, %p150
      %p152 = scmp.ne.s32.totalorder %s138, %s139
      %p153 = scmp.eq.s32.totalorder %s21, 1
      %p154 = por %p152, %p153
      %p156 = scmp.ne.s32.totalorder %s139, %s155
      %p157 = scmp.eq.s32.totalorder %s21, 0
      %p158 = por %p156, %p157
      %p159 = scmp.le.s32.totalorder 1, %s15
      %p160 = scmp.lt.s32.totalorder %s15, 3
      %p161 = pnand %p159, %p160
      %p162 = pneg %p161
      // Predicated region
      $region9: #{tpu_custom_call.1} parent=5 // pred_check
        _
      $region10: #{tpu_custom_call.1} parent=5 // pred_check_branch
        %164 = sbr.rel (%p161) target = $region12
      $region11: #{tpu_custom_call.1} parent=5 // pred_region
        %s165 = ssub.s32 %s15, 1
        // Predicated region
        $region13: #{tpu_custom_call.1} parent=11 // pred_check
          %p166 = pneg %p62
        $region14: #{tpu_custom_call.1} parent=11 // pred_check_branch
          %168 = sbr.rel (%p166) target = $region16
        $region15: #{tpu_custom_call.1} parent=11 // pred_region
          _
        $region16: #{tpu_custom_call.1} parent=11 // pred_fallthru
          _
        // Predicated region
        $region17: #{tpu_custom_call.1} parent=11 // pred_check
          %p169 = pneg %p83
        $region18: #{tpu_custom_call.1} parent=11 // pred_check_branch
          %171 = sbr.rel (%p169) target = $region20
        $region19: #{tpu_custom_call.1} parent=11 // pred_region
          _
        $region20: #{tpu_custom_call.1} parent=11 // pred_fallthru
          _
        // Predicated region
        $region21: #{tpu_custom_call.1} parent=11 // pred_check
          %p172 = pneg %p104
        $region22: #{tpu_custom_call.1} parent=11 // pred_check_branch
          %174 = sbr.rel (%p172) target = $region24
        $region23: #{tpu_custom_call.1} parent=11 // pred_region
          _
        $region24: #{tpu_custom_call.1} parent=11 // pred_fallthru
          _
        // Predicated region
        $region25: #{tpu_custom_call.1} parent=11 // pred_check
          %p175 = pneg %p125
        $region26: #{tpu_custom_call.1} parent=11 // pred_check_branch
          %177 = sbr.rel (%p175) target = $region28
        $region27: #{tpu_custom_call.1} parent=11 // pred_region
          _
        $region28: #{tpu_custom_call.1} parent=11 // pred_fallthru
          _
      $region12: #{tpu_custom_call.1} parent=5 // pred_fallthru
        _
      %p178 = scmp.lt.s32.totalorder %s15, 2
      // Predicated region
      $region29: #{tpu_custom_call.1} parent=5 // pred_check
        %p179 = pneg %p178
      $region30: #{tpu_custom_call.1} parent=5 // pred_check_branch
        %181 = sbr.rel (%p179) target = $region32
      $region31: #{tpu_custom_call.1} parent=5 // pred_region
        // Predicated region
        $region33: #{tpu_custom_call.1} parent=31 // pred_check
          %p182 = pneg %p35
        $region34: #{tpu_custom_call.1} parent=31 // pred_check_branch
          %184 = sbr.rel (%p182) target = $region36
        $region35: #{tpu_custom_call.1} parent=31 // pred_region
          %s185 = smul.u32 8, %s15
          %p186 = scmp.lt.s32.totalorder %s185, 15
          %s187 = scalar_select %p186, %s185, 15
          %s188 = smul.addr %s187, 8
          %s189 = scalar_lea.vmem %s0, %s188
          %s190 = smul.u32 8, %s15
        $region36: #{tpu_custom_call.1} parent=31 // pred_fallthru
          _
      $region32: #{tpu_custom_call.1} parent=5 // pred_fallthru
        _
      %p191 = scmp.le.s32.totalorder 1, %s15
      %p192 = scmp.lt.s32.totalorder %s15, 3
      %p193 = pnand %p191, %p192
      %p194 = pneg %p193
      // Predicated region
      $region37: #{tpu_custom_call.1} parent=5 // pred_check
        _
      $region38: #{tpu_custom_call.1} parent=5 // pred_check_branch
        %196 = sbr.rel (%p193) target = $region40
      $region39: #{tpu_custom_call.1} parent=5 // pred_region
        %s197 = ssub.s32 %s15, 1
        %s198 = smul.u32 8, %s20
        %p199 = scmp.lt.s32.totalorder %s198, 15
        %s200 = scalar_select %p199, %s198, 15
        %s201 = smul.addr %s200, 8
        %s202 = scalar_lea.vmem %s0, %s201
        %p203 = pneg %p41
        %p204 = pneg %p38
        %p205 = pneg %p62
        %p206 = pneg %p59
        %p207 = pneg %p83
        %p208 = pneg %p80
        %p209 = pneg %p104
        %p210 = pneg %p101
        %p211 = pneg %p125
        %p212 = pneg %p122
        %p213 = pneg %p151
        %p214 = pneg %p148
        %s215 = sand.u32 %s138, 1
        %s216 = scalar_lea.sflag [#allocation4], %s215
        %s217 = sand.u32 %s138, 1
        %s218 = smul.addr %s217, 64
        %s219 = scalar_lea.vmem [#allocation3], %s218
        %s220 = smul.u32 8, %s20
        %p221 = scmp.lt.s32.totalorder %s220, 15
        %s222 = scalar_select %p221, %s220, 15
        %s223 = smul.addr %s222, 8
        %s224 = scalar_lea.vmem %s0, %s223
        %s225 = smul.u32 8, %s20
        %s226 = smul.u32 8, %s20
        %v227 = vld [vmem:[%s224] sm:$0xff]
        %v228 = vld [vmem:[%s224 + $0x8] sm:$0xff]
        %v229 = vld [vmem:[%s224 + $0x10] sm:$0xff]
        %v230 = vld [vmem:[%s224 + $0x18] sm:$0xff]
        %v231 = vld [vmem:[%s224 + $0x20] sm:$0xff]
        %v232 = vld [vmem:[%s224 + $0x28] sm:$0xff]
        %v233 = vld [vmem:[%s224 + $0x30] sm:$0xff]
        %v234 = vld [vmem:[%s224 + $0x38] sm:$0xff]
        %v235 = vld [vmem:[%s1] sm:$0xff]
        %v236 = vld [vmem:[%s1 + $0x8] sm:$0xff]
        %v237 = vld [vmem:[%s1 + $0x10] sm:$0xff]
        %v238 = vld [vmem:[%s1 + $0x18] sm:$0xff]
        %v239 = vld [vmem:[%s2] sm:$0x1]
        %v241 = vlaneseq
        %v242 = vshrl.u32 %v241, 7
        %v243 = vsub.s32 0, %v242
        %v244 = vrot.slane %v239, %v243
        %vm246 = vcmask 261120
        %v248 = vsel %vm246, %v227, 0
        %v251 = vsel %vm246, %v228, 0
        %v254 = vsel %vm246, %v229, 0
        %v257 = vsel %vm246, %v230, 0
        %v260 = vsel %vm246, %v231, 0
        %v263 = vsel %vm246, %v232, 0
        %v266 = vsel %vm246, %v233, 0
        %v269 = vsel %vm246, %v234, 0
        %271 = vmatprep.subr.mxu0 0.0
        %272 = vmatpush1.msra.mxu0 %v235
        %273 = vmatprep.subr.mxu0 0.0
        %274 = vmatpush1.msra.mxu0 %v236
        %275 = vmatprep.subr.mxu0 0.0
        %276 = vmatpush1.msra.mxu0 %v237
        %277 = vmatprep.subr.mxu0 0.0
        %278 = vmatpush1.msra.mxu0 %v238
        %279 = vmatprep.subr.mxu0 0.0
        %280 = vmatpush1.msra.mxu0 0.0
        %281 = vmatprep.subr.mxu0 0.0
        %282 = vmatpush1.msra.mxu0 0.0
        %283 = vmatprep.subr.mxu0 0.0
        %284 = vmatpush1.msra.mxu0 0.0
        %285 = vmatprep.subr.mxu0 0.0
        %286 = vmatpush1.msra.mxu0 0.0
        %287 = vmatprep.subr.mxu0 0.0
        %288 = vmatpush1.msra.mxu0 0.0
        %289 = vmatprep.subr.mxu0 0.0
        %290 = vmatpush1.msra.mxu0 0.0
        %291 = vmatprep.subr.mxu0 0.0
        %292 = vmatpush1.msra.mxu0 0.0
        %293 = vmatprep.subr.mxu0 0.0
        %294 = vmatpush1.msra.mxu0 0.0
        %295 = vmatprep.subr.mxu0 0.0
        %296 = vmatpush1.msra.mxu0 0.0
        %297 = vmatprep.subr.mxu0 0.0
        %298 = vmatpush1.msra.mxu0 0.0
        %299 = vmatprep.subr.mxu0 0.0
        %300 = vmatpush1.msra.mxu0 0.0
        %301 = vmatprep.subr.mxu0 0.0
        %302 = vmatpush1.msra.mxu0 0.0
        %303 = vmatprep.subr.mxu0 0.0
        %304 = vmatpush1.msra.mxu0 0.0
        %305 = vmatprep.subr.mxu0 0.0
        %306 = vmatpush1.msra.mxu0 0.0
        %307 = vmatprep.subr.mxu0 0.0
        %308 = vmatpush1.msra.mxu0 0.0
        %309 = vmatprep.subr.mxu0 0.0
        %310 = vmatpush1.msra.mxu0 0.0
        %311 = vmatprep.subr.mxu0 0.0
        %312 = vmatpush1.msra.mxu0 0.0
        %313 = vmatprep.subr.mxu0 0.0
        %314 = vmatpush1.msra.mxu0 0.0
        %315 = vmatprep.subr.mxu0 0.0
        %316 = vmatpush1.msra.mxu0 0.0
        %317 = vmatprep.subr.mxu0 0.0
        %318 = vmatpush1.msra.mxu0 0.0
        %319 = vmatprep.subr.mxu0 0.0
        %320 = vmatpush1.msra.mxu0 0.0
        %321 = vmatprep.subr.mxu0 0.0
        %322 = vmatpush1.msra.mxu0 0.0
        %323 = vmatprep.subr.mxu0 0.0
        %324 = vmatpush1.msra.mxu0 0.0
        %325 = vmatprep.subr.mxu0 0.0
        %326 = vmatpush1.msra.mxu0 0.0
        %327 = vmatprep.subr.mxu0 0.0
        %328 = vmatpush1.msra.mxu0 0.0
        %329 = vmatprep.subr.mxu0 0.0
        %330 = vmatpush1.msra.mxu0 0.0
        %331 = vmatprep.subr.mxu0 0.0
        %332 = vmatpush1.msra.mxu0 0.0
        %333 = vmatprep.subr.mxu0 0.0
        %334 = vmatpush1.msra.mxu0 0.0
        %335 = vmatprep.mubr.f32.mxu0 0.0
        %336 = vmatmul.mubr.f32.gmra.mrb[0].mxu0 %v248
        %v337 = vpop.f32.mrb[0].mxu0
        %v338 = vadd.f32 %v244, %v337
        %v339 = vpop.f32.mrb[0].mxu0
        %340 = vmatprep.mubr.f32.mxu0 0.0
        %341 = vmatmul.mubr.f32.gmra.mrb[0].mxu0 %v251
        %v342 = vpop.f32.mrb[0].mxu0
        %v343 = vadd.f32 %v244, %v342
        %v344 = vpop.f32.mrb[0].mxu0
        %345 = vmatprep.mubr.f32.mxu0 0.0
        %346 = vmatmul.mubr.f32.gmra.mrb[0].mxu0 %v254
        %v347 = vpop.f32.mrb[0].mxu0
        %v348 = vadd.f32 %v244, %v347
        %v349 = vpop.f32.mrb[0].mxu0
        %350 = vmatprep.mubr.f32.mxu0 0.0
        %351 = vmatmul.mubr.f32.gmra.mrb[0].mxu0 %v257
        %v352 = vpop.f32.mrb[0].mxu0
        %v353 = vadd.f32 %v244, %v352
        %v354 = vpop.f32.mrb[0].mxu0
        %355 = vmatprep.mubr.f32.mxu0 0.0
        %356 = vmatmul.mubr.f32.gmra.mrb[0].mxu0 %v260
        %v357 = vpop.f32.mrb[0].mxu0
        %v358 = vadd.f32 %v244, %v357
        %v359 = vpop.f32.mrb[0].mxu0
        %360 = vmatprep.mubr.f32.mxu0 0.0
        %361 = vmatmul.mubr.f32.gmra.mrb[0].mxu0 %v263
        %v362 = vpop.f32.mrb[0].mxu0
        %v363 = vadd.f32 %v244, %v362
        %v364 = vpop.f32.mrb[0].mxu0
        %365 = vmatprep.mubr.f32.mxu0 0.0
        %366 = vmatmul.mubr.f32.gmra.mrb[0].mxu0 %v266
        %v367 = vpop.f32.mrb[0].mxu0
        %v368 = vadd.f32 %v244, %v367
        %v369 = vpop.f32.mrb[0].mxu0
        %370 = vmatprep.mubr.f32.mxu0 0.0
        %371 = vmatmul.mubr.f32.gmra.mrb[0].mxu0 %v269
        %v372 = vpop.f32.mrb[0].mxu0
        %v373 = vadd.f32 %v244, %v372
        %v374 = vpop.f32.mrb[0].mxu0
        %375 = vdwg.mxu0
        %v376 = vxor.u32 %v338, 2147483648
        %v377 = vxor.u32 %v343, 2147483648
        %v378 = vxor.u32 %v348, 2147483648
        %v379 = vxor.u32 %v353, 2147483648
        %v380 = vxor.u32 %v358, 2147483648
        %v381 = vxor.u32 %v363, 2147483648
        %v382 = vxor.u32 %v368, 2147483648
        %v383 = vxor.u32 %v373, 2147483648
        %v384 = vmul.f32 %v376, 1.442695
        %v385 = vpow.pop %v384
        %v386 = vmul.f32 %v377, 1.442695
        %v387 = vpow.pop %v386
        %v388 = vmul.f32 %v378, 1.442695
        %v389 = vpow.pop %v388
        %v390 = vmul.f32 %v379, 1.442695
        %v391 = vpow.pop %v390
        %v392 = vmul.f32 %v380, 1.442695
        %v393 = vpow.pop %v392
        %v394 = vmul.f32 %v381, 1.442695
        %v395 = vpow.pop %v394
        %v396 = vmul.f32 %v382, 1.442695
        %v397 = vpow.pop %v396
        %v398 = vmul.f32 %v383, 1.442695
        %v399 = vpow.pop %v398
        %v400 = vadd.f32 %v385, 1.0
        %v401 = vadd.f32 %v387, 1.0
        %v402 = vadd.f32 %v389, 1.0
        %v403 = vadd.f32 %v391, 1.0
        %v404 = vadd.f32 %v393, 1.0
        %v405 = vadd.f32 %v395, 1.0
        %v406 = vadd.f32 %v397, 1.0
        %v407 = vadd.f32 %v399, 1.0
        %v408 = vrcp.pop %v400
        %v409 = vmul.f32 1.0, %v408
        %v410 = vrcp.pop %v401
        %v411 = vmul.f32 1.0, %v410
        %v412 = vrcp.pop %v402
        %v413 = vmul.f32 1.0, %v412
        %v414 = vrcp.pop %v403
        %v415 = vmul.f32 1.0, %v414
        %v416 = vrcp.pop %v404
        %v417 = vmul.f32 1.0, %v416
        %v418 = vrcp.pop %v405
        %v419 = vmul.f32 1.0, %v418
        %v420 = vrcp.pop %v406
        %v421 = vmul.f32 1.0, %v420
        %v422 = vrcp.pop %v407
        %v423 = vmul.f32 1.0, %v422
        %v424 = vmul.f32 %v338, %v409
        %v425 = vmul.f32 %v343, %v411
        %v426 = vmul.f32 %v348, %v413
        %v427 = vmul.f32 %v353, %v415
        %v428 = vmul.f32 %v358, %v417
        %v429 = vmul.f32 %v363, %v419
        %v430 = vmul.f32 %v368, %v421
        %v431 = vmul.f32 %v373, %v423
        %v432 = vld [vmem:[%s3] sm:$0x1]
        %v434 = vlaneseq
        %v435 = vshrl.u32 %v434, 7
        %v436 = vsub.s32 0, %v435
        %v437 = vrot.slane %v432, %v436
        %v439 = vmul.f32 %v424, %v437
        %v440 = vmul.f32 %v425, %v437
        %v441 = vmul.f32 %v426, %v437
        %v442 = vmul.f32 %v427, %v437
        %v443 = vmul.f32 %v428, %v437
        %v444 = vmul.f32 %v429, %v437
        %v445 = vmul.f32 %v430, %v437
        %v446 = vmul.f32 %v431, %v437
        %447 = vadd.xlane.f32.xlu0 %v439
        %v448 = vpop.xlane.xlu0 %447
        %449 = vadd.xlane.f32.xlu0 %v440
        %v450 = vpop.xlane.xlu0 %449
        %451 = vadd.xlane.f32.xlu0 %v441
        %v452 = vpop.xlane.xlu0 %451
        %453 = vadd.xlane.f32.xlu0 %v442
        %v454 = vpop.xlane.xlu0 %453
        %455 = vadd.xlane.f32.xlu0 %v443
        %v456 = vpop.xlane.xlu0 %455
        %457 = vadd.xlane.f32.xlu0 %v444
        %v458 = vpop.xlane.xlu0 %457
        %459 = vadd.xlane.f32.xlu0 %v445
        %v460 = vpop.xlane.xlu0 %459
        %461 = vadd.xlane.f32.xlu0 %v446
        %v462 = vpop.xlane.xlu0 %461
        %s463 = sld [smem:[#allocation2]]
        %v464 = vstv %s463
        %v465 = vadd.f32 %v448, %v464
        %v466 = vadd.f32 %v450, %v464
        %v467 = vadd.f32 %v452, %v464
        %v468 = vadd.f32 %v454, %v464
        %v469 = vadd.f32 %v456, %v464
        %v470 = vadd.f32 %v458, %v464
        %v471 = vadd.f32 %v460, %v464
        %v472 = vadd.f32 %v462, %v464
        %v473 = vlaneseq
        %v474 = vand.u32 %v473, 127
        %vm475 = vcmp.eq.s32.totalorder %v474, 16
        %v476 = vsel %vm475, %v465, %v424
        %v477 = vsel %vm475, %v466, %v425
        %v478 = vsel %vm475, %v467, %v426
        %v479 = vsel %vm475, %v468, %v427
        %v480 = vsel %vm475, %v469, %v428
        %v481 = vsel %vm475, %v470, %v429
        %v482 = vsel %vm475, %v471, %v430
        %v483 = vsel %vm475, %v472, %v431
        %484 = vst [vmem:[%s219] sm:$0xff] %v476
        %485 = vst [vmem:[%s219 + $0x8] sm:$0xff] %v477
        %486 = vst [vmem:[%s219 + $0x10] sm:$0xff] %v478
        %487 = vst [vmem:[%s219 + $0x18] sm:$0xff] %v479
        %488 = vst [vmem:[%s219 + $0x20] sm:$0xff] %v480
        %489 = vst [vmem:[%s219 + $0x28] sm:$0xff] %v481
        %490 = vst [vmem:[%s219 + $0x30] sm:$0xff] %v482
        %491 = vst [vmem:[%s219 + $0x38] sm:$0xff] %v483
        %s492 = sand.u32 %s138, 1
        %s493 = scalar_lea.sflag [#allocation4], %s492
        %s494 = sand.u32 %s138, 1
        %s495 = smul.addr %s494, 64
        %s496 = scalar_lea.vmem [#allocation3], %s495
        // Predicated region
        $region41: #{tpu_custom_call.1} parent=39 // pred_check
          %p497 = pneg %p148
        $region42: #{tpu_custom_call.1} parent=39 // pred_check_branch
          %499 = sbr.rel (%p497) target = $region44
        $region43: #{tpu_custom_call.1} parent=39 // pred_region
          %s500 = smul.u32 8, %s20
          %s502 = ssub.s32 1024, 1024
          %503 = vsyncadd %s493, %s502
          %s504 = smul.addr %s500, 128
          %s505 = scalar_lea.hbm %s5, %s504
          %s506 = sshll.u32 %s496, 4
          %s507 = int_to_ptr.vmem [resolvable:$true] %s506
          %512 = dma.vmem_to_hbm [thread:$0]  %s507, 1024, %s505, %s493, 128, 128, 8
        $region44: #{tpu_custom_call.1} parent=39 // pred_fallthru
          _
      $region40: #{tpu_custom_call.1} parent=5 // pred_fallthru
        _
      %p513 = scmp.le.s32.totalorder 2, %s15
      // Predicated region
      $region45: #{tpu_custom_call.1} parent=5 // pred_check
        %p514 = pneg %p513
      $region46: #{tpu_custom_call.1} parent=5 // pred_check_branch
        %516 = sbr.rel (%p514) target = $region48
      $region47: #{tpu_custom_call.1} parent=5 // pred_region
        %s517 = ssub.s32 %s15, 2
        // Predicated region
        $region49: #{tpu_custom_call.1} parent=47 // pred_check
          %p518 = pneg %p154
        $region50: #{tpu_custom_call.1} parent=47 // pred_check_branch
          %520 = sbr.rel (%p518) target = $region52
        $region51: #{tpu_custom_call.1} parent=47 // pred_region
          %s521 = sand.u32 %s139, 1
          %s522 = scalar_lea.sflag [#allocation4], %s521
          %s523 = sand.u32 %s139, 1
          %s524 = smul.addr %s523, 64
          %s525 = scalar_lea.vmem [#allocation3], %s524
          %526 = dma.done %s522, 1024
        $region52: #{tpu_custom_call.1} parent=47 // pred_fallthru
          _
      $region48: #{tpu_custom_call.1} parent=5 // pred_fallthru
        _
    $region6: #{tpu_custom_call.1} parent=1 // loop_footer
      %s19 = sadd.s32 1, %s15
    $region7: #{tpu_custom_call.1} parent=1 // loop_footer_branch
      %14 = sbr.rel target = $region3
    $region8: #{tpu_custom_call.1} parent=1 // loop_exit
      _
    %527 = vsyncpa [#allocation4], 1
    %s528 = scalar_lea.sflag [#allocation4], 1
    %529 = vsyncpa %s528, 1

</llo_original>
